<compile_context>
chip_gen: v6e
topology: v6e:2x2x1
jax: 0.10.0
libtpu: 0.0.40
codegen_flags: <defaults>
</compile_context>

<pallas_src>
import jax
import jax.numpy as jnp
from jax.experimental import pallas as pl
from jax.experimental.pallas import tpu as pltpu


def _round_up(v, m):
    return ((v + m - 1) // m) * m


def _vmem_estimate(tn, ts, C, hidden_p, out_p, itemsize, n_buf):
    """Rough per-core VMEM bytes for the chosen tiling (incl. double buffers)."""
    x_tile = tn * _round_up(C, 8) * ts * itemsize
    acc = _round_up(tn, 8) * _round_up(C, 128) * 4
    params = 2 * 4 * (_round_up(C, 8) * hidden_p
                      + _round_up(hidden_p, 8) * out_p
                      + 8 * hidden_p + 8 * out_p)
    out_tile = 2 * _round_up(tn, 8) * out_p * 4
    return n_buf * x_tile + acc + params + out_tile


def _select_tiles(N_pad, C, HW_p, itemsize, hidden_p, out_p, budget):
    """Largest (ts, tn) that fits the VMEM budget; ts (contiguous DMA segment
    length) is the bigger lever, so it is prioritized."""
    if N_pad % 8 == 0:
        tns = [t for t in range(min(128, N_pad), 0, -8) if N_pad % t == 0]
        if not tns:
            tns = [N_pad]
    else:
        tns = [N_pad]  # small ragged batch: full-extent block
    tss = [d for d in range(HW_p, 0, -128) if HW_p % d == 0]
    if not tss:
        tss = [HW_p]
    for ts in tss:
        for tn in tns:
            if _vmem_estimate(tn, ts, C, hidden_p, out_p, itemsize, 2) <= budget:
                return tn, ts
    return tns[-1], tss[-1]


def classifier_kernel(x_ref, w0_ref, b0_ref, w1_ref, b1_ref, o_ref, acc_ref):
    k = pl.program_id(1)

    @pl.when(k == 0)
    def _():
        acc_ref[...] = jnp.zeros_like(acc_ref)

    # Per-tile spatial reduce (XLU) straight into the tiny (tn, C) accumulator.
    acc_ref[...] += jnp.sum(x_ref[...].astype(jnp.float32), axis=-1)

    @pl.when(k == pl.num_programs(1) - 1)
    def _():
        # 1/HW is folded into w0, so acc (spatial sum) feeds the MXU directly.
        h = jnp.dot(acc_ref[...], w0_ref[...], preferred_element_type=jnp.float32)
        h = jnp.maximum(h + b0_ref[...], 0.0)
        out = jnp.dot(h, w1_ref[...], preferred_element_type=jnp.float32)
        o_ref[...] = (out + b1_ref[...]).astype(o_ref.dtype)


def classifier_forward(x_nchw, w0, b0, w1, b1):
    """x_nchw: (N, C, H, W), f32 or bf16.
    PyTorch nn.Linear layouts: w0 (hidden, C), b0 (hidden,),
    w1 (out, hidden), b1 (out,). Returns (N, out) float32."""
    N, C, H, W = x_nchw.shape
    hidden = w0.shape[0]
    out_channels = w1.shape[0]
    HW = H * W

    # Free reshape (no data movement): collapse spatial dims, keep native dtype.
    x3 = x_nchw.reshape(N, C, HW)
    itemsize = jnp.dtype(x3.dtype).itemsize

    # Lane-dense spatial dim: pad HW up to a multiple of 128 when ragged.
    # Zeros are exact for the spatial sum (true 1/HW folded into w0 below).
    HW_p = _round_up(HW, 128)
    if HW_p != HW:
        # TODO(synk): for very small HW (e.g. 7x7 heads) a fused (N, C*HW)
        # layout with an in-kernel segmented reduce avoids this pad traffic.
        x3 = jnp.pad(x3, ((0, 0), (0, 0), (0, HW_p - HW)))

    # Batch padding: only when N is large and ragged (avoids tn=N VMEM hazard).
    if N % 8 == 0 or N <= 8:
        N_pad = N
    else:
        N_pad = _round_up(N, 8)
    if N_pad != N:
        x3 = jnp.pad(x3, ((0, N_pad - N), (0, 0), (0, 0)))

    # Lane-friendly zero padding of the tiny FC params (exact no-op: padded
    # hidden columns pass 0 through ReLU and meet zero rows of w1_p).
    hidden_p = _round_up(hidden, 128)
    out_p = _round_up(out_channels, 128)
    inv_hw = 1.0 / float(HW)
    w0_p = jnp.pad(w0.T.astype(jnp.float32) * inv_hw,          # fold GAP scale
                   ((0, 0), (0, hidden_p - hidden)))            # (C, hidden_p)
    b0_p = jnp.pad(b0.astype(jnp.float32).reshape(1, -1),
                   ((0, 0), (0, hidden_p - hidden)))            # (1, hidden_p)
    w1_p = jnp.pad(w1.T.astype(jnp.float32),
                   ((0, hidden_p - hidden), (0, out_p - out_channels)))
    b1_p = jnp.pad(b1.astype(jnp.float32).reshape(1, -1),
                   ((0, 0), (0, out_p - out_channels)))         # (1, out_p)

    # Generation-aware VMEM budget (v7x 64 MiB per core vs v5e/v6e 128 MiB).
    try:
        vmem_cap = int(pltpu.get_tpu_info().vmem_capacity_bytes)
    except Exception:
        vmem_cap = 64 * 1024 * 1024  # conservative fallback (v7x per-core)
    budget = vmem_cap // 2

    tn, ts = _select_tiles(N_pad, C, HW_p, itemsize, hidden_p, out_p, budget)
    spatial_steps = HW_p // ts
    grid = (N_pad // tn, spatial_steps)

    # Deeper buffering on x only when the (pure-DMA) spatial axis is long and
    # VMEM allows a third buffer.
    use_buf3 = (spatial_steps >= 3 and
                _vmem_estimate(tn, ts, C, hidden_p, out_p, itemsize, 3) <= budget)
    x_index = lambda n, k: (n, 0, k)
    x_spec = pl.BlockSpec((tn, C, ts), x_index)
    if use_buf3:
        try:
            x_spec = pl.BlockSpec((tn, C, ts), x_index,
                                  pipeline_mode=pl.Buffered(3))
        except Exception:
            x_spec = pl.BlockSpec((tn, C, ts), x_index)
            use_buf3 = False

    cparams = dict(dimension_semantics=("parallel", "arbitrary"))
    est = _vmem_estimate(tn, ts, C, hidden_p, out_p, itemsize, 3 if use_buf3 else 2)
    if est > 16 * 1024 * 1024:  # exceed tightest (v5e) scoped-VMEM default
        cparams["vmem_limit_bytes"] = int(
            min(max(est * 5 // 4, 32 * 1024 * 1024), vmem_cap - 4 * 1024 * 1024))

    cost = pl.CostEstimate(
        flops=int(N_pad * C * HW_p                  # GAP accumulation
                  + 2 * N_pad * C * hidden_p        # linear 0
                  + 2 * N_pad * hidden_p * out_p),  # linear 1
        transcendentals=0,
        bytes_accessed=int(N_pad * C * HW_p * itemsize
                           + (C * hidden_p + hidden_p * out_p
                              + hidden_p + out_p) * 4
                           + N_pad * out_p * 4),
    )

    out_padded = pl.pallas_call(
        classifier_kernel,
        out_shape=jax.ShapeDtypeStruct((N_pad, out_p), jnp.float32),
        grid_spec=pltpu.PrefetchScalarGridSpec(
            num_scalar_prefetch=0,
            grid=grid,
            in_specs=[
                x_spec,
                pl.BlockSpec((C, hidden_p), lambda n, k: (0, 0)),
                pl.BlockSpec((1, hidden_p), lambda n, k: (0, 0)),
                pl.BlockSpec((hidden_p, out_p), lambda n, k: (0, 0)),
                pl.BlockSpec((1, out_p), lambda n, k: (0, 0)),
            ],
            out_specs=pl.BlockSpec((tn, out_p), lambda n, k: (n, 0)),
            scratch_shapes=[pltpu.VMEM((tn, C), jnp.float32)],
        ),
        compiler_params=pltpu.CompilerParams(**cparams),
        cost_estimate=cost,
    )(x3, w0_p, b0_p, w1_p, b1_p)

    return out_padded[:N, :out_channels]


def reference_forward(x_nchw, w0, b0, w1, b1):
    gap = jnp.mean(x_nchw.astype(jnp.float32), axis=(2, 3))
    h = jnp.maximum(gap @ w0.T.astype(jnp.float32) + b0.astype(jnp.float32), 0.0)
    return h @ w1.T.astype(jnp.float32) + b1.astype(jnp.float32)


if __name__ == "__main__":
    # Small shapes consistent with the module's forward.
    N, C, H, W = 2, 32, 16, 16           # batch, in_channels, spatial
    hidden = int(C * 1.5)                # 48
    out_channels = 10

    key = jax.random.PRNGKey(0)
    kx, k0w, k0b, k1w, k1b = jax.random.split(key, 5)

    x = jax.random.normal(kx, (N, C, H, W), dtype=jnp.float32)

    # PyTorch nn.Linear layouts: W (out, in), b (out,).
    bound0 = 1.0 / (C ** 0.5)
    w0 = jax.random.uniform(k0w, (hidden, C), minval=-bound0, maxval=bound0,
                            dtype=jnp.float32)
    b0 = jax.random.uniform(k0b, (hidden,), minval=-bound0, maxval=bound0,
                            dtype=jnp.float32)
    bound1 = 1.0 / (hidden ** 0.5)
    w1 = jax.random.uniform(k1w, (out_channels, hidden), minval=-bound1,
                            maxval=bound1, dtype=jnp.float32)
    b1 = jax.random.uniform(k1b, (out_channels,), minval=-bound1, maxval=bound1,
                            dtype=jnp.float32)

    # f32 path.
    out = jax.block_until_ready(classifier_forward(x, w0, b0, w1, b1))
    ref = reference_forward(x, w0, b0, w1, b1)
    assert out.shape == (N, out_channels)
    assert jnp.allclose(out, ref, atol=1e-4, rtol=1e-4), "f32 mismatch vs reference"

    # bf16-streamed input path (half the HBM bytes on the dominant traffic).
    x_bf16 = x.astype(jnp.bfloat16)
    out_bf16 = jax.block_until_ready(classifier_forward(x_bf16, w0, b0, w1, b1))
    ref_bf16 = reference_forward(x_bf16, w0, b0, w1, b1)
    assert jnp.allclose(out_bf16, ref_bf16, atol=1e-3, rtol=1e-3), \
        "bf16 mismatch vs reference"

    print("KERNEL_OK")
</pallas_src>

<mosaic_0001>
module attributes {stable_mosaic.version = 11 : i64} {
  func.func @classifier_kernel(%arg0: i32, %arg1: i32, %arg2: memref<2x32x256xf32, #tpu.memory_space<vmem>>, %arg3: memref<32x128xf32, #tpu.memory_space<vmem>>, %arg4: memref<1x128xf32, #tpu.memory_space<vmem>>, %arg5: memref<128x128xf32, #tpu.memory_space<vmem>>, %arg6: memref<1x128xf32, #tpu.memory_space<vmem>>, %arg7: memref<2x128xf32, #tpu.memory_space<vmem>>, %arg8: memref<2x32xf32, #tpu.memory_space<vmem>>) attributes {dimension_semantics = [#tpu.dimension_semantics<parallel>, #tpu.dimension_semantics<arbitrary>], iteration_bounds = array<i64: 1, 1>, scalar_prefetch = 0 : i64, scratch_operands = 1 : i64, tpu.core_type = #tpu.core_type<tc>, window_params = [{transform_indices = @transform_0, window_bounds = array<i64: 2, 32, 256>}, {pipeline_mode = #tpu.pipeline_mode<synchronous>, transform_indices = @transform_1, window_bounds = array<i64: 32, 128>}, {pipeline_mode = #tpu.pipeline_mode<synchronous>, transform_indices = @transform_2, window_bounds = array<i64: 1, 128>}, {pipeline_mode = #tpu.pipeline_mode<synchronous>, transform_indices = @transform_3, window_bounds = array<i64: 128, 128>}, {pipeline_mode = #tpu.pipeline_mode<synchronous>, transform_indices = @transform_4, window_bounds = array<i64: 1, 128>}, {transform_indices = @transform_5, window_bounds = array<i64: 2, 128>}]} {
    %c0_i32 = arith.constant 0 : i32
    %0 = arith.cmpi eq, %arg1, %c0_i32 : i32
    %1 = arith.extui %0 : i1 to i32
    %c0_i32_0 = arith.constant 0 : i32
    %2 = arith.cmpi ne, %1, %c0_i32_0 : i32
    scf.if %2 {
      %cst_9 = arith.constant 0.000000e+00 : f32
      %11 = vector.broadcast %cst_9 : f32 to vector<2x32xf32>
      %c0_10 = arith.constant 0 : index
      %c0_11 = arith.constant 0 : index
      %12 = vector.load %arg8[%c0_10, %c0_11] : memref<2x32xf32, #tpu.memory_space<vmem>>, vector<2x32xf32>
      tpu.vector_store %arg8[%c0_10, %c0_11], %11 {strides = array<i32>} : memref<2x32xf32, #tpu.memory_space<vmem>>, vector<2x32xf32>,
    } else {
    }
    %c0 = arith.constant 0 : index
    %c0_1 = arith.constant 0 : index
    %3 = vector.load %arg8[%c0, %c0_1] : memref<2x32xf32, #tpu.memory_space<vmem>>, vector<2x32xf32>
    %c0_2 = arith.constant 0 : index
    %c0_3 = arith.constant 0 : index
    %c0_4 = arith.constant 0 : index
    %4 = vector.load %arg2[%c0_2, %c0_3, %c0_4] : memref<2x32x256xf32, #tpu.memory_space<vmem>>, vector<2x32x256xf32>
    %cst = arith.constant dense<0.000000e+00> : vector<2x32xf32>
    %5 = vector.multi_reduction <add>, %4, %cst [2] : vector<2x32x256xf32> to vector<2x32xf32>
    %6 = arith.addf %3, %5 : vector<2x32xf32>
    %c0_5 = arith.constant 0 : index
    %c0_6 = arith.constant 0 : index
    %7 = vector.load %arg8[%c0_5, %c0_6] : memref<2x32xf32, #tpu.memory_space<vmem>>, vector<2x32xf32>
    tpu.vector_store %arg8[%c0_5, %c0_6], %6 {strides = array<i32>} : memref<2x32xf32, #tpu.memory_space<vmem>>, vector<2x32xf32>,
    %c0_i32_7 = arith.constant 0 : i32
    %8 = arith.cmpi eq, %arg1, %c0_i32_7 : i32
    %9 = arith.extui %8 : i1 to i32
    %c0_i32_8 = arith.constant 0 : i32
    %10 = arith.cmpi ne, %9, %c0_i32_8 : i32
    scf.if %10 {
      %c0_9 = arith.constant 0 : index
      %c0_10 = arith.constant 0 : index
      %11 = vector.load %arg8[%c0_9, %c0_10] : memref<2x32xf32, #tpu.memory_space<vmem>>, vector<2x32xf32>
      %c0_11 = arith.constant 0 : index
      %c0_12 = arith.constant 0 : index
      %12 = vector.load %arg3[%c0_11, %c0_12] : memref<32x128xf32, #tpu.memory_space<vmem>>, vector<32x128xf32>
      %cst_13 = arith.constant dense<0.000000e+00> : vector<2x128xf32>
      %13 = tpu.matmul %11, %12, %cst_13 {dimension_numbers = #tpu.dot_dimension_numbers<[1], [0], [0], [1], [0, 0, 1, 1], [], []>} : vector<2x32xf32>, vector<32x128xf32>, vector<2x128xf32> -> vector<2x128xf32>
      %c0_14 = arith.constant 0 : index
      %c0_15 = arith.constant 0 : index
      %14 = vector.load %arg4[%c0_14, %c0_15] : memref<1x128xf32, #tpu.memory_space<vmem>>, vector<1x128xf32>
      %15 = vector.broadcast %14 : vector<1x128xf32> to vector<2x128xf32>
      %16 = arith.addf %13, %15 : vector<2x128xf32>
      %cst_16 = arith.constant 0.000000e+00 : f32
      %17 = vector.broadcast %cst_16 : f32 to vector<2x128xf32>
      %18 = arith.maximumf %16, %17 : vector<2x128xf32>
      %c0_17 = arith.constant 0 : index
      %c0_18 = arith.constant 0 : index
      %19 = vector.load %arg5[%c0_17, %c0_18] : memref<128x128xf32, #tpu.memory_space<vmem>>, vector<128x128xf32>
      %cst_19 = arith.constant dense<0.000000e+00> : vector<2x128xf32>
      %20 = tpu.matmul %18, %19, %cst_19 {dimension_numbers = #tpu.dot_dimension_numbers<[1], [0], [0], [1], [0, 0, 1, 1], [], []>} : vector<2x128xf32>, vector<128x128xf32>, vector<2x128xf32> -> vector<2x128xf32>
      %c0_20 = arith.constant 0 : index
      %c0_21 = arith.constant 0 : index
      %21 = vector.load %arg6[%c0_20, %c0_21] : memref<1x128xf32, #tpu.memory_space<vmem>>, vector<1x128xf32>
      %22 = vector.broadcast %21 : vector<1x128xf32> to vector<2x128xf32>
      %23 = arith.addf %20, %22 : vector<2x128xf32>
      %c0_22 = arith.constant 0 : index
      %c0_23 = arith.constant 0 : index
      %24 = vector.load %arg7[%c0_22, %c0_23] : memref<2x128xf32, #tpu.memory_space<vmem>>, vector<2x128xf32>
      tpu.vector_store %arg7[%c0_22, %c0_23], %23 {strides = array<i32>} : memref<2x128xf32, #tpu.memory_space<vmem>>, vector<2x128xf32>,
    } else {
    }
    return
  }
  func.func @transform_0(%arg0: i32, %arg1: i32) -> (i32, i32, i32) {
    %c0_i32 = arith.constant 0 : i32
    %c0_i32_0 = arith.constant 0 : i32
    return %arg0, %c0_i32, %arg1 : i32, i32, i32
  }
  func.func @transform_1(%arg0: i32, %arg1: i32) -> (i32, i32) {
    %c0_i32 = arith.constant 0 : i32
    %c0_i32_0 = arith.constant 0 : i32
    %c0_i32_1 = arith.constant 0 : i32
    return %c0_i32, %c0_i32_0 : i32, i32
  }
  func.func @transform_2(%arg0: i32, %arg1: i32) -> (i32, i32) {
    %c0_i32 = arith.constant 0 : i32
    %c0_i32_0 = arith.constant 0 : i32
    %c0_i32_1 = arith.constant 0 : i32
    return %c0_i32, %c0_i32_0 : i32, i32
  }
  func.func @transform_3(%arg0: i32, %arg1: i32) -> (i32, i32) {
    %c0_i32 = arith.constant 0 : i32
    %c0_i32_0 = arith.constant 0 : i32
    %c0_i32_1 = arith.constant 0 : i32
    return %c0_i32, %c0_i32_0 : i32, i32
  }
  func.func @transform_4(%arg0: i32, %arg1: i32) -> (i32, i32) {
    %c0_i32 = arith.constant 0 : i32
    %c0_i32_0 = arith.constant 0 : i32
    %c0_i32_1 = arith.constant 0 : i32
    return %c0_i32, %c0_i32_0 : i32, i32
  }
  func.func @transform_5(%arg0: i32, %arg1: i32) -> (i32, i32) {
    %c0_i32 = arith.constant 0 : i32
    %c0_i32_0 = arith.constant 0 : i32
    return %arg0, %c0_i32 : i32, i32
  }
}

</mosaic_0001>

<llo_original>
// kernel: tpu_custom_call.1
$region0: #{tpu_custom_call.1}
  #allocation0 [shape = 'u32[]', space=smem, size = 0x4, offset = 0x4, fixed_abs, tag = 'smem constant byte address 0x4 - core index']
  #allocation1 [shape = 'u32[144,128]{1,0:T(1,128)}', space=vmem, size = 0x12000, scoped, tag = 'internal scratch']
  #allocation2 [shape = 'f32[2,32]{1,0:T(2,128)}', space=vmem, size = 0x400, scoped, tag = 'scratch operand']
  %s0 = inlined_call_operand.hbm [shape: f32[2,32,256], index: 0, kind: input, shape index: {}]
  %s1 = inlined_call_operand.hbm [shape: f32[32,128], index: 1, kind: input, shape index: {}]
  %s2 = inlined_call_operand.vmem [shape: f32[1,128], index: 2, kind: input, shape index: {}]
  %s3 = inlined_call_operand.hbm [shape: f32[128,128], index: 3, kind: input, shape index: {}]
  %s4 = inlined_call_operand.vmem [shape: f32[1,128], index: 4, kind: input, shape index: {}]
  %s5 = inlined_call_operand.hbm [shape: f32[2,128], index: 5, kind: output, shape index: {}]
  %s6 = sld [smem:[#allocation0]]
  $region50: #{tpu_custom_call.1} parent=0
    _
  %s8 = ssub.s32 1, %s6
  %s9 = scalar_select 0, %s8, %s6
  $region1: #{tpu_custom_call.1} parent=0
    #allocation3 [shape = 'u8[65536]{0}', space=vmem, size = 0x10000, scoped, tag = 'input window, operand 0, single buffered']
    #allocation4 [shape = 's32[1]{0}', space=sflag, size = 0x4, scoped, tag = 'scoped memory for tpu_custom_call.1']
    #allocation5 [shape = 's32[1]{0}', space=sflag, size = 0x4, scoped, tag = 'scoped memory for tpu_custom_call.1']
    #allocation6 [shape = 'u8[16384]{0}', space=vmem, size = 0x4000, scoped, tag = 'input window, operand 1, single buffered']
    #allocation7 [shape = 's32[1]{0}', space=sflag, size = 0x4, scoped, tag = 'scoped memory for tpu_custom_call.1']
    #allocation8 [shape = 'u8[65536]{0}', space=vmem, size = 0x10000, scoped, tag = 'input window, operand 3, single buffered']
    #allocation9 [shape = 'u8[1024]{0}', space=vmem, size = 0x400, scoped, tag = 'output window, operand 0, single buffered']
    %10 = vsyncpa [#allocation4], 0
    %11 = vsyncpa [#allocation7], 0
    %12 = vsyncpa [#allocation5], 0
    // Predicated region
    $region2: #{tpu_custom_call.1} parent=1 // pred_check
      _
    $region3: #{tpu_custom_call.1} parent=1 // pred_check_branch
      %14 = sbr.rel (0) target = $region5
    $region4: #{tpu_custom_call.1} parent=1 // pred_region
      %s16 = ssub.s32 2048, 2048
      %17 = vsyncadd [#allocation4], %s16
      %s18 = sshll.u32 [#allocation3], 4
      %s19 = int_to_ptr.vmem [resolvable:$true] %s18
      %24 = dma.hbm_to_vmem [thread:$0]  %s0, 2048, %s19, [#allocation4], 256, 256, 16
    $region5: #{tpu_custom_call.1} parent=1 // pred_fallthru
      _
    // Predicated region
    $region6: #{tpu_custom_call.1} parent=1 // pred_check
      _
    $region7: #{tpu_custom_call.1} parent=1 // pred_check_branch
      %26 = sbr.rel (0) target = $region9
    $region8: #{tpu_custom_call.1} parent=1 // pred_region
      %s28 = ssub.s32 512, 512
      %29 = vsyncadd [#allocation7], %s28
      %s30 = sshll.u32 [#allocation6], 4
      %s31 = int_to_ptr.vmem [resolvable:$true] %s30
      %36 = dma.hbm_to_vmem [thread:$0]  %s1, 512, %s31, [#allocation7], 128, 128, 8
    $region9: #{tpu_custom_call.1} parent=1 // pred_fallthru
      _
    // Predicated region
    $region10: #{tpu_custom_call.1} parent=1 // pred_check
      _
    $region11: #{tpu_custom_call.1} parent=1 // pred_check_branch
      %38 = sbr.rel (0) target = $region13
    $region12: #{tpu_custom_call.1} parent=1 // pred_region
      _
    $region13: #{tpu_custom_call.1} parent=1 // pred_fallthru
      _
    // Predicated region
    $region14: #{tpu_custom_call.1} parent=1 // pred_check
      _
    $region15: #{tpu_custom_call.1} parent=1 // pred_check_branch
      %40 = sbr.rel (0) target = $region17
    $region16: #{tpu_custom_call.1} parent=1 // pred_region
      %s42 = ssub.s32 2048, 2048
      %43 = vsyncadd [#allocation7], %s42
      %s44 = sshll.u32 [#allocation8], 4
      %s45 = int_to_ptr.vmem [resolvable:$true] %s44
      %50 = dma.hbm_to_vmem [thread:$0]  %s3, 2048, %s45, [#allocation7], 128, 128, 8
    $region17: #{tpu_custom_call.1} parent=1 // pred_fallthru
      _
    // Predicated region
    $region18: #{tpu_custom_call.1} parent=1 // pred_check
      _
    $region19: #{tpu_custom_call.1} parent=1 // pred_check_branch
      %52 = sbr.rel (0) target = $region21
    $region20: #{tpu_custom_call.1} parent=1 // pred_region
      _
    $region21: #{tpu_custom_call.1} parent=1 // pred_fallthru
      _
    // Predicated region
    $region22: #{tpu_custom_call.1} parent=1 // pred_check
      _
    $region23: #{tpu_custom_call.1} parent=1 // pred_check_branch
      %54 = sbr.rel (0) target = $region25
    $region24: #{tpu_custom_call.1} parent=1 // pred_region
      %55 = dma.done [#allocation4], 2048
    $region25: #{tpu_custom_call.1} parent=1 // pred_fallthru
      _
    // Predicated region
    $region26: #{tpu_custom_call.1} parent=1 // pred_check
      _
    $region27: #{tpu_custom_call.1} parent=1 // pred_check_branch
      %57 = sbr.rel (0) target = $region29
    $region28: #{tpu_custom_call.1} parent=1 // pred_region
      %58 = dma.done [#allocation7], 512
    $region29: #{tpu_custom_call.1} parent=1 // pred_fallthru
      _
    // Predicated region
    $region30: #{tpu_custom_call.1} parent=1 // pred_check
      _
    $region31: #{tpu_custom_call.1} parent=1 // pred_check_branch
      %60 = sbr.rel (0) target = $region33
    $region32: #{tpu_custom_call.1} parent=1 // pred_region
      %61 = dma.done [#allocation7], 2048
    $region33: #{tpu_custom_call.1} parent=1 // pred_fallthru
      _
    %p62 = scmp.eq.s32.totalorder 0, 0
    // Predicated region
    $region34: #{tpu_custom_call.1} parent=1 // pred_check
      %p63 = pneg %p62
    $region35: #{tpu_custom_call.1} parent=1 // pred_check_branch
      %65 = sbr.rel (%p63) target = $region37
    $region36: #{tpu_custom_call.1} parent=1 // pred_region
      %vm66 = vcmask 254976
      %67 = vst.msk [vmem:[#allocation2] sm:$0x3] %vm66, 0.0
    $region37: #{tpu_custom_call.1} parent=1 // pred_fallthru
      _
    %v68 = vld [vmem:[#allocation2] sm:$0x3]
    %v69 = vld [vmem:[#allocation3] sm:$0xff]
    %v70 = vld [vmem:[#allocation3 + $0x8] sm:$0xff]
    %v71 = vld [vmem:[#allocation3 + $0x10] sm:$0xff]
    %v72 = vld [vmem:[#allocation3 + $0x18] sm:$0xff]
    %v73 = vld [vmem:[#allocation3 + $0x20] sm:$0xff]
    %v74 = vld [vmem:[#allocation3 + $0x28] sm:$0xff]
    %v75 = vld [vmem:[#allocation3 + $0x30] sm:$0xff]
    %v76 = vld [vmem:[#allocation3 + $0x38] sm:$0xff]
    %v77 = vld [vmem:[#allocation3 + $0x40] sm:$0xff]
    %v78 = vld [vmem:[#allocation3 + $0x48] sm:$0xff]
    %v79 = vld [vmem:[#allocation3 + $0x50] sm:$0xff]
    %v80 = vld [vmem:[#allocation3 + $0x58] sm:$0xff]
    %v81 = vld [vmem:[#allocation3 + $0x60] sm:$0xff]
    %v82 = vld [vmem:[#allocation3 + $0x68] sm:$0xff]
    %v83 = vld [vmem:[#allocation3 + $0x70] sm:$0xff]
    %v84 = vld [vmem:[#allocation3 + $0x78] sm:$0xff]
    %v85 = vadd.f32 %v69, %v70
    %86 = vadd.xlane.f32.xlu0 %v85
    %v87 = vpop.xlane.xlu0 %86
    %v88 = vadd.f32 %v71, %v72
    %89 = vadd.xlane.f32.xlu0 %v88
    %v90 = vpop.xlane.xlu0 %89
    %v91 = vadd.f32 %v73, %v74
    %92 = vadd.xlane.f32.xlu0 %v91
    %v93 = vpop.xlane.xlu0 %92
    %v94 = vadd.f32 %v75, %v76
    %95 = vadd.xlane.f32.xlu0 %v94
    %v96 = vpop.xlane.xlu0 %95
    %v97 = vadd.f32 %v77, %v78
    %98 = vadd.xlane.f32.xlu0 %v97
    %v99 = vpop.xlane.xlu0 %98
    %v100 = vadd.f32 %v79, %v80
    %101 = vadd.xlane.f32.xlu0 %v100
    %v102 = vpop.xlane.xlu0 %101
    %v103 = vadd.f32 %v81, %v82
    %104 = vadd.xlane.f32.xlu0 %v103
    %v105 = vpop.xlane.xlu0 %104
    %v106 = vadd.f32 %v83, %v84
    %107 = vadd.xlane.f32.xlu0 %v106
    %v108 = vpop.xlane.xlu0 %107
    %v117 = vlaneseq
    %v118 = vand.u32 %v117, 127
    %v119 = vlaneseq
    %v120 = vshrl.u32 %v119, 7
    %v121 = vsub.s32 %v118, %v120
    %v122 = vrot.slane %v87, %v121
    %v123 = vadd.s32 %v118, 4294967288
    %v124 = vlaneseq
    %v125 = vshrl.u32 %v124, 7
    %v126 = vsub.s32 %v123, %v125
    %v127 = vrot.slane %v90, %v126
    %vm128 = vcmask 130112
    %v129 = vsel %vm128, %v127, %v122
    %v130 = vadd.s32 %v118, 4294967280
    %v131 = vlaneseq
    %v132 = vshrl.u32 %v131, 7
    %v133 = vsub.s32 %v130, %v132
    %v134 = vrot.slane %v93, %v133
    %vm135 = vcmask 195712
    %v136 = vsel %vm135, %v134, %v129
    %v137 = vadd.s32 %v118, 4294967272
    %v138 = vlaneseq
    %v139 = vshrl.u32 %v138, 7
    %v140 = vsub.s32 %v137, %v139
    %v141 = vrot.slane %v96, %v140
    %vm142 = vcmask 261312
    %v143 = vsel %vm142, %v141, %v136
    %v144 = vlaneseq
    %v145 = vshrl.u32 %v144, 7
    %v146 = vsub.s32 %v118, %v145
    %v147 = vrot.slane %v99, %v146
    %v148 = vlaneseq
    %v149 = vshrl.u32 %v148, 7
    %v150 = vsub.s32 %v123, %v149
    %v151 = vrot.slane %v102, %v150
    %v152 = vsel %vm128, %v151, %v147
    %v153 = vlaneseq
    %v154 = vshrl.u32 %v153, 7
    %v155 = vsub.s32 %v130, %v154
    %v156 = vrot.slane %v105, %v155
    %v157 = vsel %vm135, %v156, %v152
    %v158 = vlaneseq
    %v159 = vshrl.u32 %v158, 7
    %v160 = vsub.s32 %v137, %v159
    %v161 = vrot.slane %v108, %v160
    %v162 = vsel %vm142, %v161, %v157
    %vm163 = vcmask 1041409
    %v164 = vsel %vm163, %v162, %v143
    %v166 = vadd.f32 %v68, %v164
    %vm167 = vcmask 254976
    %168 = vst.msk [vmem:[#allocation2] sm:$0x3] %vm167, %v166
    // Predicated region
    $region38: #{tpu_custom_call.1} parent=1 // pred_check
      %p169 = pneg %p62
    $region39: #{tpu_custom_call.1} parent=1 // pred_check_branch
      %171 = sbr.rel (%p169) target = $region41
    $region40: #{tpu_custom_call.1} parent=1 // pred_region
      %v172 = vld [vmem:[#allocation2] sm:$0x3]
      %v173 = vld [vmem:[#allocation6] sm:$0xff]
      %v174 = vld [vmem:[#allocation6 + $0x8] sm:$0xff]
      %v175 = vld [vmem:[#allocation6 + $0x10] sm:$0xff]
      %v176 = vld [vmem:[#allocation6 + $0x18] sm:$0xff]
      %v177 = vld [vmem:[%s2] sm:$0x1]
      %v179 = vlaneseq
      %v180 = vshrl.u32 %v179, 7
      %v181 = vsub.s32 0, %v180
      %v182 = vrot.slane %v177, %v181
      %vm184 = vcmask 261120
      %v186 = vsel %vm184, %v172, 0
      %188 = vmatprep.subr.mxu0 0.0
      %189 = vmatpush1.msra.mxu0 0.0
      %190 = vmatprep.subr.mxu0 0.0
      %191 = vmatpush1.msra.mxu0 0.0
      %192 = vmatprep.subr.mxu0 0.0
      %193 = vmatpush1.msra.mxu0 0.0
      %194 = vmatprep.subr.mxu0 0.0
      %195 = vmatpush1.msra.mxu0 0.0
      %196 = vmatprep.subr.mxu0 0.0
      %197 = vmatpush1.msra.mxu0 0.0
      %198 = vmatprep.subr.mxu0 0.0
      %199 = vmatpush1.msra.mxu0 0.0
      %200 = vmatprep.subr.mxu0 0.0
      %201 = vmatpush1.msra.mxu0 0.0
      %202 = vmatprep.subr.mxu0 0.0
      %203 = vmatpush1.msra.mxu0 0.0
      %204 = vmatprep.subr.mxu0 0.0
      %205 = vmatpush1.msra.mxu0 0.0
      %206 = vmatprep.subr.mxu0 0.0
      %207 = vmatpush1.msra.mxu0 0.0
      %208 = vmatprep.subr.mxu0 0.0
      %209 = vmatpush1.msra.mxu0 0.0
      %210 = vmatprep.subr.mxu0 0.0
      %211 = vmatpush1.msra.mxu0 0.0
      %212 = vmatprep.subr.mxu0 0.0
      %213 = vmatpush1.msra.mxu0 %v176
      %214 = vmatprep.subr.mxu0 0.0
      %215 = vmatpush1.msra.mxu0 %v175
      %216 = vmatprep.subr.mxu0 0.0
      %217 = vmatpush1.msra.mxu0 %v174
      %218 = vmatprep.subr.mxu0 0.0
      %219 = vmatpush1.msra.mxu0 %v173
      %220 = vmatprep.subr.mxu0 0.0
      %221 = vmatpush2.msra.mxu0 0.0
      %222 = vmatprep.subr.mxu0 0.0
      %223 = vmatpush2.msra.mxu0 0.0
      %224 = vmatprep.subr.mxu0 0.0
      %225 = vmatpush2.msra.mxu0 0.0
      %226 = vmatprep.subr.mxu0 0.0
      %227 = vmatpush2.msra.mxu0 0.0
      %228 = vmatprep.subr.mxu0 0.0
      %229 = vmatpush2.msra.mxu0 0.0
      %230 = vmatprep.subr.mxu0 0.0
      %231 = vmatpush2.msra.mxu0 0.0
      %232 = vmatprep.subr.mxu0 0.0
      %233 = vmatpush2.msra.mxu0 0.0
      %234 = vmatprep.subr.mxu0 0.0
      %235 = vmatpush2.msra.mxu0 0.0
      %236 = vmatprep.subr.mxu0 0.0
      %237 = vmatpush2.msra.mxu0 0.0
      %238 = vmatprep.subr.mxu0 0.0
      %239 = vmatpush2.msra.mxu0 0.0
      %240 = vmatprep.subr.mxu0 0.0
      %241 = vmatpush2.msra.mxu0 0.0
      %242 = vmatprep.subr.mxu0 0.0
      %243 = vmatpush2.msra.mxu0 0.0
      %244 = vmatprep.subr.mxu0 0.0
      %245 = vmatpush2.msra.mxu0 0.0
      %246 = vmatprep.subr.mxu0 0.0
      %247 = vmatpush2.msra.mxu0 0.0
      %248 = vmatprep.subr.mxu0 0.0
      %249 = vmatpush2.msra.mxu0 0.0
      %250 = vmatprep.subr.mxu0 0.0
      %251 = vmatpush2.msra.mxu0 0.0
      %252 = vmatprep.mubr.f32.mxu0 0.0
      %253 = vmatmul.mubr.f32.gmra.mxu0 %v186
      %v254 = vpop.f32.mrf.mxu0
      %v255 = vadd.f32 %v182, %v254
      %v256 = vpop.f32.mrf.mxu0
      %257 = vdwg.mxu0
      %v258 = vmax.f32 %v255, 0.0
      %v259 = vld [vmem:[#allocation8] sm:$0xff]
      %v260 = vld [vmem:[#allocation8 + $0x8] sm:$0xff]
      %v261 = vld [vmem:[#allocation8 + $0x10] sm:$0xff]
      %v262 = vld [vmem:[#allocation8 + $0x18] sm:$0xff]
      %v263 = vld [vmem:[#allocation8 + $0x20] sm:$0xff]
      %v264 = vld [vmem:[#allocation8 + $0x28] sm:$0xff]
      %v265 = vld [vmem:[#allocation8 + $0x30] sm:$0xff]
      %v266 = vld [vmem:[#allocation8 + $0x38] sm:$0xff]
      %v267 = vld [vmem:[#allocation8 + $0x40] sm:$0xff]
      %v268 = vld [vmem:[#allocation8 + $0x48] sm:$0xff]
      %v269 = vld [vmem:[#allocation8 + $0x50] sm:$0xff]
      %v270 = vld [vmem:[#allocation8 + $0x58] sm:$0xff]
      %v271 = vld [vmem:[#allocation8 + $0x60] sm:$0xff]
      %v272 = vld [vmem:[#allocation8 + $0x68] sm:$0xff]
      %v273 = vld [vmem:[#allocation8 + $0x70] sm:$0xff]
      %v274 = vld [vmem:[#allocation8 + $0x78] sm:$0xff]
      %v275 = vld [vmem:[%s4] sm:$0x1]
      %v277 = vlaneseq
      %v278 = vshrl.u32 %v277, 7
      %v279 = vsub.s32 0, %v278
      %v280 = vrot.slane %v275, %v279
      %282 = vmatprep.subr.mxu0 0.0
      %283 = vmatpush1.msra.mxu0 %v274
      %284 = vmatprep.subr.mxu0 0.0
      %285 = vmatpush1.msra.mxu0 %v273
      %286 = vmatprep.subr.mxu0 0.0
      %287 = vmatpush1.msra.mxu0 %v272
      %288 = vmatprep.subr.mxu0 0.0
      %289 = vmatpush1.msra.mxu0 %v271
      %290 = vmatprep.subr.mxu0 0.0
      %291 = vmatpush1.msra.mxu0 %v270
      %292 = vmatprep.subr.mxu0 0.0
      %293 = vmatpush1.msra.mxu0 %v269
      %294 = vmatprep.subr.mxu0 0.0
      %295 = vmatpush1.msra.mxu0 %v268
      %296 = vmatprep.subr.mxu0 0.0
      %297 = vmatpush1.msra.mxu0 %v267
      %298 = vmatprep.subr.mxu0 0.0
      %299 = vmatpush1.msra.mxu0 %v266
      %300 = vmatprep.subr.mxu0 0.0
      %301 = vmatpush1.msra.mxu0 %v265
      %302 = vmatprep.subr.mxu0 0.0
      %303 = vmatpush1.msra.mxu0 %v264
      %304 = vmatprep.subr.mxu0 0.0
      %305 = vmatpush1.msra.mxu0 %v263
      %306 = vmatprep.subr.mxu0 0.0
      %307 = vmatpush1.msra.mxu0 %v262
      %308 = vmatprep.subr.mxu0 0.0
      %309 = vmatpush1.msra.mxu0 %v261
      %310 = vmatprep.subr.mxu0 0.0
      %311 = vmatpush1.msra.mxu0 %v260
      %312 = vmatprep.subr.mxu0 0.0
      %313 = vmatpush1.msra.mxu0 %v259
      %314 = vmatprep.subr.mxu0 0.0
      %315 = vmatpush2.msra.mxu0 0.0
      %316 = vmatprep.subr.mxu0 0.0
      %317 = vmatpush2.msra.mxu0 0.0
      %318 = vmatprep.subr.mxu0 0.0
      %319 = vmatpush2.msra.mxu0 0.0
      %320 = vmatprep.subr.mxu0 0.0
      %321 = vmatpush2.msra.mxu0 0.0
      %322 = vmatprep.subr.mxu0 0.0
      %323 = vmatpush2.msra.mxu0 0.0
      %324 = vmatprep.subr.mxu0 0.0
      %325 = vmatpush2.msra.mxu0 0.0
      %326 = vmatprep.subr.mxu0 0.0
      %327 = vmatpush2.msra.mxu0 0.0
      %328 = vmatprep.subr.mxu0 0.0
      %329 = vmatpush2.msra.mxu0 0.0
      %330 = vmatprep.subr.mxu0 0.0
      %331 = vmatpush2.msra.mxu0 0.0
      %332 = vmatprep.subr.mxu0 0.0
      %333 = vmatpush2.msra.mxu0 0.0
      %334 = vmatprep.subr.mxu0 0.0
      %335 = vmatpush2.msra.mxu0 0.0
      %336 = vmatprep.subr.mxu0 0.0
      %337 = vmatpush2.msra.mxu0 0.0
      %338 = vmatprep.subr.mxu0 0.0
      %339 = vmatpush2.msra.mxu0 0.0
      %340 = vmatprep.subr.mxu0 0.0
      %341 = vmatpush2.msra.mxu0 0.0
      %342 = vmatprep.subr.mxu0 0.0
      %343 = vmatpush2.msra.mxu0 0.0
      %344 = vmatprep.subr.mxu0 0.0
      %345 = vmatpush2.msra.mxu0 0.0
      %346 = vmatprep.mubr.f32.mxu0 0.0
      %347 = vmatmul.mubr.f32.gmra.mxu0 %v258
      %v348 = vpop.f32.mrf.mxu0
      %v349 = vadd.f32 %v280, %v348
      %v350 = vpop.f32.mrf.mxu0
      %351 = vdwg.mxu0
      %352 = vst [vmem:[#allocation9] sm:$0x3] %v349
    $region41: #{tpu_custom_call.1} parent=1 // pred_fallthru
      _
    // Predicated region
    $region42: #{tpu_custom_call.1} parent=1 // pred_check
      _
    $region43: #{tpu_custom_call.1} parent=1 // pred_check_branch
      %354 = sbr.rel (0) target = $region45
    $region44: #{tpu_custom_call.1} parent=1 // pred_region
      %s356 = ssub.s32 32, 32
      %357 = vsyncadd [#allocation5], %s356
      %s359 = sshll.u32 [#allocation9], 4
      %s360 = int_to_ptr.vmem [resolvable:$true] %s359
      %362 = dma.vmem_to_hbm [thread:$0]  %s360, 32, %s5, [#allocation5]
    $region45: #{tpu_custom_call.1} parent=1 // pred_fallthru
      _
    // Predicated region
    $region46: #{tpu_custom_call.1} parent=1 // pred_check
      _
    $region47: #{tpu_custom_call.1} parent=1 // pred_check_branch
      %364 = sbr.rel (0) target = $region49
    $region48: #{tpu_custom_call.1} parent=1 // pred_region
      %365 = dma.done [#allocation5], 32
    $region49: #{tpu_custom_call.1} parent=1 // pred_fallthru
      _
    %366 = vsyncpa [#allocation4], 1
    %367 = vsyncpa [#allocation7], 1
    %368 = vsyncpa [#allocation5], 1

</llo_original>
